<compile_context>
chip_gen: v6e
topology: v6e:2x2x1
jax: 0.10.0
libtpu: 0.0.40
codegen_flags: <defaults>
</compile_context>

<pallas_src>
import jax
import jax.numpy as jnp
from jax import lax
from jax.experimental import pallas as pl
from jax.experimental.pallas import tpu as pltpu


def _round_up(n, m):
    return ((n + m - 1) // m) * m


def ais_kernel(scal_ref, x_ref, w1_ref, b1_ref, w2_ref, b2_ref, w3_ref,
               delta_ref, out_ref):
    # SMEM scalars: beta, (1 - beta), b3, sum(log1mp)
    beta = scal_ref[0]
    one_minus_beta = scal_ref[1]
    b3 = scal_ref[2]
    log1mp_sum = scal_ref[3]

    x_f32 = x_ref[...].astype(jnp.float32)        # (TILE_B, D), 0/1 exact
    x_bf16 = x_f32.astype(jnp.bfloat16)           # lossless for 0/1

    # --- self.model(x): MLP energy; bf16 MXU matmuls, f32 accumulation ---
    h1 = jnp.dot(x_bf16, w1_ref[...],
                 preferred_element_type=jnp.float32) + b1_ref[...]
    h1 = jnp.maximum(h1, 0.0)
    h2 = jnp.dot(h1.astype(jnp.bfloat16), w2_ref[...],
                 preferred_element_type=jnp.float32) + b2_ref[...]
    h2 = jnp.maximum(h2, 0.0)

    # Final H -> 1 projection, batch-on-lanes: (1,H) . (TILE_B,H)^T -> (1,TILE_B)
    logpx = lax.dot_general(
        w3_ref[...], h2, (((1,), (1,)), ((), ())),
        preferred_element_type=jnp.float32) + b3                    # (1, TILE_B)

    # --- self.init_dist.log_prob(x).sum(-1): delta . x + sum(log1mp) ---
    logpi = lax.dot_general(
        delta_ref[...], x_f32, (((1,), (1,)), ((), ())),
        preferred_element_type=jnp.float32) + log1mp_sum            # (1, TILE_B)

    # --- AIS interpolation (lane-dense write) ---
    out_ref[...] = logpx * beta + logpi * one_minus_beta


def ais_forward(x, beta, p, *, tile_b=2048):
    """x: (B, D) float32 in {0,1}; beta: scalar; returns (B,) float32."""
    B, D = x.shape
    H = p["w1"].shape[1]

    # Guarantee >=2 grid steps (megacore on v7x; harmless on v5e/v6e) while
    # keeping tiles large enough to amortize per-step overhead.
    two_tc_cap = _round_up(pl.cdiv(B, 2), 256)
    tile_b = min(tile_b, two_tc_cap, _round_up(B, 32))
    tile_b = max(32, _round_up(tile_b, 32))        # int8 sublane packing

    b_pad = _round_up(B, tile_b)
    num_tiles = b_pad // tile_b

    # x in {0,1}: stream as int8 (half the bytes of bf16, quarter of f32).
    x_i8 = x.astype(jnp.int8)
    if b_pad != B:
        x_i8 = jnp.pad(x_i8, ((0, b_pad - B), (0, 0)))

    beta = jnp.asarray(beta, jnp.float32)
    scalars = jnp.stack([beta, 1.0 - beta,
                         p["b3"].astype(jnp.float32),
                         p["log1mp_sum"].astype(jnp.float32)])

    smem = pl.BlockSpec(memory_space=pltpu.MemorySpace.SMEM)

    def const2d(shape):
        # Constant index_map: DMA'd once, VMEM-resident across grid steps.
        return pl.BlockSpec(shape, lambda i: (0, 0))

    out = pl.pallas_call(
        ais_kernel,
        out_shape=jax.ShapeDtypeStruct((1, b_pad), jnp.float32),
        grid=(num_tiles,),
        in_specs=[
            smem,                                          # scalars
            pl.BlockSpec((tile_b, D), lambda i: (i, 0)),   # x tile (int8, streamed)
            const2d((D, H)),                               # w1 (bf16)
            const2d((1, H)),                               # b1 (f32)
            const2d((H, H)),                               # w2 (bf16)
            const2d((1, H)),                               # b2 (f32)
            const2d((1, H)),                               # w3 row (f32)
            const2d((1, D)),                               # delta = logp - log1mp
        ],
        # Lane-dense output: each step writes a full (1, tile_b) lane row.
        out_specs=pl.BlockSpec((1, tile_b), lambda i: (0, i)),
        compiler_params=pltpu.CompilerParams(
            dimension_semantics=("parallel",),             # 2 TCs on v7x
            vmem_limit_bytes=32 * 1024 * 1024,
        ),
    )(scalars, x_i8, p["w1"], p["b1"], p["w2"], p["b2"],
      p["w3_row"], p["delta"])

    return out.reshape(b_pad)[:B]                  # .squeeze() of the module


def make_params(key, D, H):
    """Deterministic synthetic params.  Returns (f32 masters, kernel params)."""
    k1, k2, k3, kp = jax.random.split(key, 4)
    w1 = jax.random.normal(k1, (D, H), jnp.float32) / jnp.sqrt(D)
    b1 = jnp.zeros((1, H), jnp.float32)
    w2 = jax.random.normal(k2, (H, H), jnp.float32) / jnp.sqrt(H)
    b2 = jnp.zeros((1, H), jnp.float32)
    w3 = jax.random.normal(k3, (H, 1), jnp.float32) / jnp.sqrt(H)
    b3 = jnp.zeros((), jnp.float32)
    probs = jax.random.uniform(kp, (1, D), jnp.float32, minval=0.05, maxval=0.95)
    logp = jnp.log(probs)
    log1mp = jnp.log1p(-probs)

    master = (w1, b1, w2, b2, w3, b3, logp, log1mp)
    kernel_params = dict(
        w1=w1.astype(jnp.bfloat16),
        b1=b1,
        w2=w2.astype(jnp.bfloat16),
        b2=b2,
        w3_row=w3.reshape(1, H),           # f32 row for batch-on-lanes dot
        b3=b3,
        delta=(logp - log1mp),             # (1, D) f32
        log1mp_sum=jnp.sum(log1mp),        # scalar f32
    )
    return master, kernel_params


def ais_reference(x, beta, master):
    """Pure-JAX f32 reference of the torch module's forward."""
    w1, b1, w2, b2, w3, b3, logp, log1mp = master
    h1 = jnp.maximum(x @ w1 + b1, 0.0)
    h2 = jnp.maximum(h1 @ w2 + b2, 0.0)
    logpx = (h2 @ w3 + b3).squeeze()
    logpi = jnp.sum(x * logp + (1.0 - x) * log1mp, axis=-1)
    return logpx * beta + logpi * (1.0 - beta)


if __name__ == "__main__":
    # Many AIS chains in one call (fills the MXU M dimension); B deliberately
    # not a multiple of the tile to exercise padding + the >=2-grid-step cap.
    B, D, H = 500, 128, 128
    key = jax.random.PRNGKey(0)
    kx, kparam = jax.random.split(key)
    # Binary samples, as expected by the oops (discrete EBM / AIS) pipeline.
    x = jax.random.bernoulli(kx, 0.5, (B, D)).astype(jnp.float32)
    beta = 0.3
    master, kernel_params = make_params(kparam, D, H)

    out = ais_forward(x, beta, kernel_params)
    jax.block_until_ready(out)

    ref = ais_reference(x, beta, master)
    assert out.shape == (B,)
    # bf16 weight/activation rounding in the MXU path -> loosened tolerance
    # (intentional; keep h1 in f32 if tighter accuracy is ever needed).
    assert jnp.allclose(out, ref, atol=5e-2, rtol=1e-3), \
        float(jnp.max(jnp.abs(out - ref)))
    print("KERNEL_OK")
</pallas_src>

<mosaic_0001>
module attributes {stable_mosaic.version = 11 : i64} {
  func.func @ais_kernel(%arg0: i32, %arg1: memref<4xf32, #tpu.memory_space<smem>>, %arg2: memref<256x128xi8, #tpu.memory_space<vmem>>, %arg3: memref<128x128xbf16, #tpu.memory_space<vmem>>, %arg4: memref<1x128xf32, #tpu.memory_space<vmem>>, %arg5: memref<128x128xbf16, #tpu.memory_space<vmem>>, %arg6: memref<1x128xf32, #tpu.memory_space<vmem>>, %arg7: memref<1x128xf32, #tpu.memory_space<vmem>>, %arg8: memref<1x128xf32, #tpu.memory_space<vmem>>, %arg9: memref<1x256xf32, #tpu.memory_space<vmem>>) attributes {dimension_semantics = [#tpu.dimension_semantics<parallel>], iteration_bounds = array<i64: 2>, scalar_prefetch = 0 : i64, scratch_operands = 0 : i64, tpu.core_type = #tpu.core_type<tc>, window_params = [{transform_indices = @transform_0, window_bounds = array<i64: 4>}, {transform_indices = @transform_1, window_bounds = array<i64: 256, 128>}, {pipeline_mode = #tpu.pipeline_mode<synchronous>, transform_indices = @transform_2, window_bounds = array<i64: 128, 128>}, {pipeline_mode = #tpu.pipeline_mode<synchronous>, transform_indices = @transform_3, window_bounds = array<i64: 1, 128>}, {pipeline_mode = #tpu.pipeline_mode<synchronous>, transform_indices = @transform_4, window_bounds = array<i64: 128, 128>}, {pipeline_mode = #tpu.pipeline_mode<synchronous>, transform_indices = @transform_5, window_bounds = array<i64: 1, 128>}, {pipeline_mode = #tpu.pipeline_mode<synchronous>, transform_indices = @transform_6, window_bounds = array<i64: 1, 128>}, {pipeline_mode = #tpu.pipeline_mode<synchronous>, transform_indices = @transform_7, window_bounds = array<i64: 1, 128>}, {transform_indices = @transform_8, window_bounds = array<i64: 1, 256>}]} {
    %c0 = arith.constant 0 : index
    %0 = memref.load %arg1[%c0] : memref<4xf32, #tpu.memory_space<smem>>
    %c1 = arith.constant 1 : index
    %1 = memref.load %arg1[%c1] : memref<4xf32, #tpu.memory_space<smem>>
    %c2 = arith.constant 2 : index
    %2 = memref.load %arg1[%c2] : memref<4xf32, #tpu.memory_space<smem>>
    %c3 = arith.constant 3 : index
    %3 = memref.load %arg1[%c3] : memref<4xf32, #tpu.memory_space<smem>>
    %c0_0 = arith.constant 0 : index
    %c0_1 = arith.constant 0 : index
    %4 = vector.load %arg2[%c0_0, %c0_1] : memref<256x128xi8, #tpu.memory_space<vmem>>, vector<256x128xi8>
    %5 = arith.sitofp %4 : vector<256x128xi8> to vector<256x128xf32>
    %6 = arith.truncf %5 : vector<256x128xf32> to vector<256x128xbf16>
    %c0_2 = arith.constant 0 : index
    %c0_3 = arith.constant 0 : index
    %7 = vector.load %arg3[%c0_2, %c0_3] : memref<128x128xbf16, #tpu.memory_space<vmem>>, vector<128x128xbf16>
    %cst = arith.constant dense<0.000000e+00> : vector<256x128xf32>
    %8 = tpu.matmul %6, %7, %cst {dimension_numbers = #tpu.dot_dimension_numbers<[1], [0], [0], [1], [0, 0, 1, 1], [], []>} : vector<256x128xbf16>, vector<128x128xbf16>, vector<256x128xf32> -> vector<256x128xf32>
    %c0_4 = arith.constant 0 : index
    %c0_5 = arith.constant 0 : index
    %9 = vector.load %arg4[%c0_4, %c0_5] : memref<1x128xf32, #tpu.memory_space<vmem>>, vector<1x128xf32>
    %10 = vector.broadcast %9 : vector<1x128xf32> to vector<256x128xf32>
    %11 = arith.addf %8, %10 : vector<256x128xf32>
    %cst_6 = arith.constant 0.000000e+00 : f32
    %12 = vector.broadcast %cst_6 : f32 to vector<256x128xf32>
    %13 = arith.maximumf %11, %12 : vector<256x128xf32>
    %14 = arith.truncf %13 : vector<256x128xf32> to vector<256x128xbf16>
    %c0_7 = arith.constant 0 : index
    %c0_8 = arith.constant 0 : index
    %15 = vector.load %arg5[%c0_7, %c0_8] : memref<128x128xbf16, #tpu.memory_space<vmem>>, vector<128x128xbf16>
    %cst_9 = arith.constant dense<0.000000e+00> : vector<256x128xf32>
    %16 = tpu.matmul %14, %15, %cst_9 {dimension_numbers = #tpu.dot_dimension_numbers<[1], [0], [0], [1], [0, 0, 1, 1], [], []>} : vector<256x128xbf16>, vector<128x128xbf16>, vector<256x128xf32> -> vector<256x128xf32>
    %c0_10 = arith.constant 0 : index
    %c0_11 = arith.constant 0 : index
    %17 = vector.load %arg6[%c0_10, %c0_11] : memref<1x128xf32, #tpu.memory_space<vmem>>, vector<1x128xf32>
    %18 = vector.broadcast %17 : vector<1x128xf32> to vector<256x128xf32>
    %19 = arith.addf %16, %18 : vector<256x128xf32>
    %cst_12 = arith.constant 0.000000e+00 : f32
    %20 = vector.broadcast %cst_12 : f32 to vector<256x128xf32>
    %21 = arith.maximumf %19, %20 : vector<256x128xf32>
    %c0_13 = arith.constant 0 : index
    %c0_14 = arith.constant 0 : index
    %22 = vector.load %arg7[%c0_13, %c0_14] : memref<1x128xf32, #tpu.memory_space<vmem>>, vector<1x128xf32>
    %cst_15 = arith.constant dense<0.000000e+00> : vector<1x256xf32>
    %23 = tpu.matmul %22, %21, %cst_15 {dimension_numbers = #tpu.dot_dimension_numbers<[1], [1], [0], [0], [0, 0, 1, 0], [], []>} : vector<1x128xf32>, vector<256x128xf32>, vector<1x256xf32> -> vector<1x256xf32>
    %24 = vector.broadcast %2 : f32 to vector<1x256xf32>
    %25 = arith.addf %23, %24 : vector<1x256xf32>
    %c0_16 = arith.constant 0 : index
    %c0_17 = arith.constant 0 : index
    %26 = vector.load %arg8[%c0_16, %c0_17] : memref<1x128xf32, #tpu.memory_space<vmem>>, vector<1x128xf32>
    %cst_18 = arith.constant dense<0.000000e+00> : vector<1x256xf32>
    %27 = tpu.matmul %26, %5, %cst_18 {dimension_numbers = #tpu.dot_dimension_numbers<[1], [1], [0], [0], [0, 0, 1, 0], [], []>} : vector<1x128xf32>, vector<256x128xf32>, vector<1x256xf32> -> vector<1x256xf32>
    %28 = vector.broadcast %3 : f32 to vector<1x256xf32>
    %29 = arith.addf %27, %28 : vector<1x256xf32>
    %30 = vector.broadcast %0 : f32 to vector<1x256xf32>
    %31 = arith.mulf %25, %30 : vector<1x256xf32>
    %32 = vector.broadcast %1 : f32 to vector<1x256xf32>
    %33 = arith.mulf %29, %32 : vector<1x256xf32>
    %34 = arith.addf %31, %33 : vector<1x256xf32>
    %c0_19 = arith.constant 0 : index
    %c0_20 = arith.constant 0 : index
    %35 = vector.load %arg9[%c0_19, %c0_20] : memref<1x256xf32, #tpu.memory_space<vmem>>, vector<1x256xf32>
    tpu.vector_store %arg9[%c0_19, %c0_20], %34 {strides = array<i32>} : memref<1x256xf32, #tpu.memory_space<vmem>>, vector<1x256xf32>,
    return
  }
  func.func @transform_0(%arg0: i32) -> i32 {
    %c0_i32 = arith.constant 0 : i32
    %c0_i32_0 = arith.constant 0 : i32
    return %c0_i32 : i32
  }
  func.func @transform_1(%arg0: i32) -> (i32, i32) {
    %c0_i32 = arith.constant 0 : i32
    %c0_i32_0 = arith.constant 0 : i32
    return %arg0, %c0_i32 : i32, i32
  }
  func.func @transform_2(%arg0: i32) -> (i32, i32) {
    %c0_i32 = arith.constant 0 : i32
    %c0_i32_0 = arith.constant 0 : i32
    %c0_i32_1 = arith.constant 0 : i32
    return %c0_i32, %c0_i32_0 : i32, i32
  }
  func.func @transform_3(%arg0: i32) -> (i32, i32) {
    %c0_i32 = arith.constant 0 : i32
    %c0_i32_0 = arith.constant 0 : i32
    %c0_i32_1 = arith.constant 0 : i32
    return %c0_i32, %c0_i32_0 : i32, i32
  }
  func.func @transform_4(%arg0: i32) -> (i32, i32) {
    %c0_i32 = arith.constant 0 : i32
    %c0_i32_0 = arith.constant 0 : i32
    %c0_i32_1 = arith.constant 0 : i32
    return %c0_i32, %c0_i32_0 : i32, i32
  }
  func.func @transform_5(%arg0: i32) -> (i32, i32) {
    %c0_i32 = arith.constant 0 : i32
    %c0_i32_0 = arith.constant 0 : i32
    %c0_i32_1 = arith.constant 0 : i32
    return %c0_i32, %c0_i32_0 : i32, i32
  }
  func.func @transform_6(%arg0: i32) -> (i32, i32) {
    %c0_i32 = arith.constant 0 : i32
    %c0_i32_0 = arith.constant 0 : i32
    %c0_i32_1 = arith.constant 0 : i32
    return %c0_i32, %c0_i32_0 : i32, i32
  }
  func.func @transform_7(%arg0: i32) -> (i32, i32) {
    %c0_i32 = arith.constant 0 : i32
    %c0_i32_0 = arith.constant 0 : i32
    %c0_i32_1 = arith.constant 0 : i32
    return %c0_i32, %c0_i32_0 : i32, i32
  }
  func.func @transform_8(%arg0: i32) -> (i32, i32) {
    %c0_i32 = arith.constant 0 : i32
    %c0_i32_0 = arith.constant 0 : i32
    return %c0_i32, %arg0 : i32, i32
  }
}

</mosaic_0001>

<llo_original>
// kernel: tpu_custom_call.1
$region0: #{tpu_custom_call.1}
  #allocation0 [shape = 'u32[]', space=smem, size = 0x4, offset = 0x4, fixed_abs, tag = 'smem constant byte address 0x4 - core index']
  #allocation1 [shape = 'u32[144,128]{1,0:T(1,128)}', space=vmem, size = 0x12000, scoped, tag = 'internal scratch']
  %s0 = inlined_call_operand.hbm [shape: f32[4], index: 0, kind: input, shape index: {}]
  %s1 = inlined_call_operand.hbm [shape: s8[512,128], index: 1, kind: input, shape index: {}]
  %s2 = inlined_call_operand.hbm [shape: bf16[128,128], index: 2, kind: input, shape index: {}]
  %s3 = inlined_call_operand.vmem [shape: f32[1,128], index: 3, kind: input, shape index: {}]
  %s4 = inlined_call_operand.hbm [shape: bf16[128,128], index: 4, kind: input, shape index: {}]
  %s5 = inlined_call_operand.vmem [shape: f32[1,128], index: 5, kind: input, shape index: {}]
  %s6 = inlined_call_operand.vmem [shape: f32[1,128], index: 6, kind: input, shape index: {}]
  %s7 = inlined_call_operand.vmem [shape: f32[1,128], index: 7, kind: input, shape index: {}]
  %s8 = inlined_call_operand.hbm [shape: f32[1,512], index: 8, kind: output, shape index: {}]
  %s9 = sld [smem:[#allocation0]]
  $region81: #{tpu_custom_call.1} parent=0
    _
  %s11 = ssub.s32 1, %s9
  %s12 = scalar_select 0, %s11, %s9
  $region1: #{tpu_custom_call.1} parent=0
    #allocation2 [shape = 'u8[512]{0}', space=smem, size = 0x200, scoped, tag = 'input window, operand 0, single buffered']
    #allocation3 [shape = 's32[2]{0}', space=sflag, size = 0x8, scoped, tag = 'scoped memory for tpu_custom_call.1']
    #allocation4 [shape = 's32[2]{0}', space=sflag, size = 0x8, scoped, tag = 'scoped memory for tpu_custom_call.1']
    #allocation5 [shape = 's32[2]{0}', space=sflag, size = 0x8, scoped, tag = 'scoped memory for tpu_custom_call.1']
    #allocation6 [shape = 'u8[65536]{0}', space=vmem, size = 0x10000, scoped, tag = 'input window, operand 1']
    #allocation7 [shape = 'u8[32768]{0}', space=vmem, size = 0x8000, scoped, tag = 'input window, operand 2, single buffered']
    #allocation8 [shape = 's32[1]{0}', space=sflag, size = 0x4, scoped, tag = 'scoped memory for tpu_custom_call.1']
    #allocation9 [shape = 'u8[32768]{0}', space=vmem, size = 0x8000, scoped, tag = 'input window, operand 4, single buffered']
    #allocation10 [shape = 'u8[2048]{0}', space=vmem, size = 0x800, scoped, tag = 'output window, operand 0']
    %13 = vsyncpa [#allocation5], 0
    %14 = vsyncpa [#allocation3], 0
    %s15 = scalar_lea.sflag [#allocation3], 1
    %16 = vsyncpa %s15, 0
    %17 = vsyncpa [#allocation8], 0
    %18 = vsyncpa [#allocation4], 0
    %s19 = scalar_lea.sflag [#allocation4], 1
    %20 = vsyncpa %s19, 0
    loop: start=0, step=1, limit=4
    $region2: #{tpu_custom_call.1} parent=1 // loop_pre_header
      _
    $region3: #{tpu_custom_call.1} parent=1 // loop_header
      %s22 = sphi 0, %s26
      %p23 = scmp.ge.s32.totalorder %s22, 4
      %s30 = sphi 0, %s30
      %s32 = sphi 0, %s30
      %s33 = sphi 0, %s32
      %s47 = sphi 0, %s33
      %s53 = sphi 0, %s55
      %s56 = sphi 0, %s53
      %s57 = sphi 0, %s56
      %s73 = sphi 0, %s57
      %s77 = sphi 0, %s77
      %s79 = sphi 0, %s77
      %s80 = sphi 0, %s79
      %s94 = sphi 0, %s80
      %s98 = sphi 0, %s98
      %s100 = sphi 0, %s98
      %s101 = sphi 0, %s100
      %s115 = sphi 0, %s101
      %s119 = sphi 0, %s119
      %s121 = sphi 0, %s119
      %s122 = sphi 0, %s121
      %s136 = sphi 0, %s122
      %s140 = sphi 0, %s140
      %s142 = sphi 0, %s140
      %s143 = sphi 0, %s142
      %s157 = sphi 0, %s143
      %s161 = sphi 0, %s161
      %s163 = sphi 0, %s161
      %s164 = sphi 0, %s163
      %s178 = sphi 0, %s164
      %s182 = sphi 0, %s182
      %s184 = sphi 0, %s182
      %s185 = sphi 0, %s184
      %s199 = sphi 0, %s185
      %s205 = sphi 0, %s207
      %s208 = sphi 0, %s205
      %s209 = sphi 0, %s208
      %s225 = sphi 0, %s209
    $region4: #{tpu_custom_call.1} parent=1 // loop_header_branch
      %25 = sbr.rel (%p23) target = $region8
    $region5: #{tpu_custom_call.1} parent=1 // loop_body
      %s27 = ssub.s32 %s22, 1
      %s28 = ssub.s32 %s22, 2
      %s29 = sadd.s32 %s22, 1
      %s31 = sadd.s32 %s30, 1
      %p34 = scmp.eq.s32.totalorder %s22, 1
      %p35 = scmp.ne.s32.totalorder %s30, %s32
      %p36 = scmp.eq.s32.totalorder %s22, 0
      %p37 = por %p35, %p36
      %p38 = scmp.ne.s32.totalorder %s30, %s32
      %p39 = scmp.eq.s32.totalorder %s27, 1
      %p40 = por %p38, %p39
      %p41 = scmp.ne.s32.totalorder %s32, %s33
      %p42 = scmp.eq.s32.totalorder %s27, 0
      %p43 = por %p41, %p42
      %p44 = scmp.ne.s32.totalorder %s32, %s33
      %p45 = scmp.eq.s32.totalorder %s28, 1
      %p46 = por %p44, %p45
      %p48 = scmp.ne.s32.totalorder %s33, %s47
      %p49 = scmp.eq.s32.totalorder %s28, 0
      %p50 = por %p48, %p49
      %s51 = ssub.s32 %s22, %s29
      %p52 = scmp.eq.s32.totalorder %s51, 0
      %s54 = sadd.s32 %s53, 1
      %s55 = scalar_select %p52, %s53, %s54
      %p58 = pneg %p52
      %p59 = scmp.eq.s32.totalorder %s22, 1
      %p60 = por %p58, %p59
      %p61 = scmp.ne.s32.totalorder %s53, %s56
      %p62 = scmp.eq.s32.totalorder %s22, 0
      %p63 = por %p61, %p62
      %p64 = scmp.ne.s32.totalorder %s53, %s56
      %p65 = scmp.eq.s32.totalorder %s27, 1
      %p66 = por %p64, %p65
      %p67 = scmp.ne.s32.totalorder %s56, %s57
      %p68 = scmp.eq.s32.totalorder %s27, 0
      %p69 = por %p67, %p68
      %p70 = scmp.ne.s32.totalorder %s56, %s57
      %p71 = scmp.eq.s32.totalorder %s28, 1
      %p72 = por %p70, %p71
      %p74 = scmp.ne.s32.totalorder %s57, %s73
      %p75 = scmp.eq.s32.totalorder %s28, 0
      %p76 = por %p74, %p75
      %s78 = sadd.s32 %s77, 1
      %p81 = scmp.eq.s32.totalorder %s22, 1
      %p82 = scmp.ne.s32.totalorder %s77, %s79
      %p83 = scmp.eq.s32.totalorder %s22, 0
      %p84 = por %p82, %p83
      %p85 = scmp.ne.s32.totalorder %s77, %s79
      %p86 = scmp.eq.s32.totalorder %s27, 1
      %p87 = por %p85, %p86
      %p88 = scmp.ne.s32.totalorder %s79, %s80
      %p89 = scmp.eq.s32.totalorder %s27, 0
      %p90 = por %p88, %p89
      %p91 = scmp.ne.s32.totalorder %s79, %s80
      %p92 = scmp.eq.s32.totalorder %s28, 1
      %p93 = por %p91, %p92
      %p95 = scmp.ne.s32.totalorder %s80, %s94
      %p96 = scmp.eq.s32.totalorder %s28, 0
      %p97 = por %p95, %p96
      %s99 = sadd.s32 %s98, 1
      %p102 = scmp.eq.s32.totalorder %s22, 1
      %p103 = scmp.ne.s32.totalorder %s98, %s100
      %p104 = scmp.eq.s32.totalorder %s22, 0
      %p105 = por %p103, %p104
      %p106 = scmp.ne.s32.totalorder %s98, %s100
      %p107 = scmp.eq.s32.totalorder %s27, 1
      %p108 = por %p106, %p107
      %p109 = scmp.ne.s32.totalorder %s100, %s101
      %p110 = scmp.eq.s32.totalorder %s27, 0
      %p111 = por %p109, %p110
      %p112 = scmp.ne.s32.totalorder %s100, %s101
      %p113 = scmp.eq.s32.totalorder %s28, 1
      %p114 = por %p112, %p113
      %p116 = scmp.ne.s32.totalorder %s101, %s115
      %p117 = scmp.eq.s32.totalorder %s28, 0
      %p118 = por %p116, %p117
      %s120 = sadd.s32 %s119, 1
      %p123 = scmp.eq.s32.totalorder %s22, 1
      %p124 = scmp.ne.s32.totalorder %s119, %s121
      %p125 = scmp.eq.s32.totalorder %s22, 0
      %p126 = por %p124, %p125
      %p127 = scmp.ne.s32.totalorder %s119, %s121
      %p128 = scmp.eq.s32.totalorder %s27, 1
      %p129 = por %p127, %p128
      %p130 = scmp.ne.s32.totalorder %s121, %s122
      %p131 = scmp.eq.s32.totalorder %s27, 0
      %p132 = por %p130, %p131
      %p133 = scmp.ne.s32.totalorder %s121, %s122
      %p134 = scmp.eq.s32.totalorder %s28, 1
      %p135 = por %p133, %p134
      %p137 = scmp.ne.s32.totalorder %s122, %s136
      %p138 = scmp.eq.s32.totalorder %s28, 0
      %p139 = por %p137, %p138
      %s141 = sadd.s32 %s140, 1
      %p144 = scmp.eq.s32.totalorder %s22, 1
      %p145 = scmp.ne.s32.totalorder %s140, %s142
      %p146 = scmp.eq.s32.totalorder %s22, 0
      %p147 = por %p145, %p146
      %p148 = scmp.ne.s32.totalorder %s140, %s142
      %p149 = scmp.eq.s32.totalorder %s27, 1
      %p150 = por %p148, %p149
      %p151 = scmp.ne.s32.totalorder %s142, %s143
      %p152 = scmp.eq.s32.totalorder %s27, 0
      %p153 = por %p151, %p152
      %p154 = scmp.ne.s32.totalorder %s142, %s143
      %p155 = scmp.eq.s32.totalorder %s28, 1
      %p156 = por %p154, %p155
      %p158 = scmp.ne.s32.totalorder %s143, %s157
      %p159 = scmp.eq.s32.totalorder %s28, 0
      %p160 = por %p158, %p159
      %s162 = sadd.s32 %s161, 1
      %p165 = scmp.eq.s32.totalorder %s22, 1
      %p166 = scmp.ne.s32.totalorder %s161, %s163
      %p167 = scmp.eq.s32.totalorder %s22, 0
      %p168 = por %p166, %p167
      %p169 = scmp.ne.s32.totalorder %s161, %s163
      %p170 = scmp.eq.s32.totalorder %s27, 1
      %p171 = por %p169, %p170
      %p172 = scmp.ne.s32.totalorder %s163, %s164
      %p173 = scmp.eq.s32.totalorder %s27, 0
      %p174 = por %p172, %p173
      %p175 = scmp.ne.s32.totalorder %s163, %s164
      %p176 = scmp.eq.s32.totalorder %s28, 1
      %p177 = por %p175, %p176
      %p179 = scmp.ne.s32.totalorder %s164, %s178
      %p180 = scmp.eq.s32.totalorder %s28, 0
      %p181 = por %p179, %p180
      %s183 = sadd.s32 %s182, 1
      %p186 = scmp.eq.s32.totalorder %s22, 1
      %p187 = scmp.ne.s32.totalorder %s182, %s184
      %p188 = scmp.eq.s32.totalorder %s22, 0
      %p189 = por %p187, %p188
      %p190 = scmp.ne.s32.totalorder %s182, %s184
      %p191 = scmp.eq.s32.totalorder %s27, 1
      %p192 = por %p190, %p191
      %p193 = scmp.ne.s32.totalorder %s184, %s185
      %p194 = scmp.eq.s32.totalorder %s27, 0
      %p195 = por %p193, %p194
      %p196 = scmp.ne.s32.totalorder %s184, %s185
      %p197 = scmp.eq.s32.totalorder %s28, 1
      %p198 = por %p196, %p197
      %p200 = scmp.ne.s32.totalorder %s185, %s199
      %p201 = scmp.eq.s32.totalorder %s28, 0
      %p202 = por %p200, %p201
      %s203 = ssub.s32 %s22, %s29
      %p204 = scmp.eq.s32.totalorder %s203, 0
      %s206 = sadd.s32 %s205, 1
      %s207 = scalar_select %p204, %s205, %s206
      %p210 = pneg %p204
      %p211 = scmp.eq.s32.totalorder %s22, 1
      %p212 = por %p210, %p211
      %p213 = scmp.ne.s32.totalorder %s205, %s208
      %p214 = scmp.eq.s32.totalorder %s22, 0
      %p215 = por %p213, %p214
      %p216 = scmp.ne.s32.totalorder %s205, %s208
      %p217 = scmp.eq.s32.totalorder %s27, 1
      %p218 = por %p216, %p217
      %p219 = scmp.ne.s32.totalorder %s208, %s209
      %p220 = scmp.eq.s32.totalorder %s27, 0
      %p221 = por %p219, %p220
      %p222 = scmp.ne.s32.totalorder %s208, %s209
      %p223 = scmp.eq.s32.totalorder %s28, 1
      %p224 = por %p222, %p223
      %p226 = scmp.ne.s32.totalorder %s209, %s225
      %p227 = scmp.eq.s32.totalorder %s28, 0
      %p228 = por %p226, %p227
      %p229 = scmp.le.s32.totalorder 1, %s22
      %p230 = scmp.lt.s32.totalorder %s22, 3
      %p231 = pnand %p229, %p230
      %p232 = pneg %p231
      // Predicated region
      $region9: #{tpu_custom_call.1} parent=5 // pred_check
        _
      $region10: #{tpu_custom_call.1} parent=5 // pred_check_branch
        %234 = sbr.rel (%p231) target = $region12
      $region11: #{tpu_custom_call.1} parent=5 // pred_region
        %s235 = ssub.s32 %s22, 1
        // Predicated region
        $region13: #{tpu_custom_call.1} parent=11 // pred_check
          %p236 = pneg %p43
        $region14: #{tpu_custom_call.1} parent=11 // pred_check_branch
          %238 = sbr.rel (%p236) target = $region16
        $region15: #{tpu_custom_call.1} parent=11 // pred_region
          %s240 = ssub.s32 16, 16
          %241 = vsyncadd [#allocation5], %s240
          %244 = dma.hbm_to_smem %s0, 16, [#allocation2], [#allocation5]
        $region16: #{tpu_custom_call.1} parent=11 // pred_fallthru
          _
        // Predicated region
        $region17: #{tpu_custom_call.1} parent=11 // pred_check
          %p245 = pneg %p90
        $region18: #{tpu_custom_call.1} parent=11 // pred_check_branch
          %247 = sbr.rel (%p245) target = $region20
        $region19: #{tpu_custom_call.1} parent=11 // pred_region
          %s249 = ssub.s32 1024, 1024
          %250 = vsyncadd [#allocation8], %s249
          %s251 = sshll.u32 [#allocation7], 4
          %s252 = int_to_ptr.vmem [resolvable:$true] %s251
          %257 = dma.hbm_to_vmem [thread:$0]  %s2, 1024, %s252, [#allocation8], 64, 64, 4
        $region20: #{tpu_custom_call.1} parent=11 // pred_fallthru
          _
        // Predicated region
        $region21: #{tpu_custom_call.1} parent=11 // pred_check
          %p258 = pneg %p111
        $region22: #{tpu_custom_call.1} parent=11 // pred_check_branch
          %260 = sbr.rel (%p258) target = $region24
        $region23: #{tpu_custom_call.1} parent=11 // pred_region
          _
        $region24: #{tpu_custom_call.1} parent=11 // pred_fallthru
          _
        // Predicated region
        $region25: #{tpu_custom_call.1} parent=11 // pred_check
          %p261 = pneg %p132
        $region26: #{tpu_custom_call.1} parent=11 // pred_check_branch
          %263 = sbr.rel (%p261) target = $region28
        $region27: #{tpu_custom_call.1} parent=11 // pred_region
          %s265 = ssub.s32 1024, 1024
          %266 = vsyncadd [#allocation8], %s265
          %s267 = sshll.u32 [#allocation9], 4
          %s268 = int_to_ptr.vmem [resolvable:$true] %s267
          %273 = dma.hbm_to_vmem [thread:$0]  %s4, 1024, %s268, [#allocation8], 64, 64, 4
        $region28: #{tpu_custom_call.1} parent=11 // pred_fallthru
          _
        // Predicated region
        $region29: #{tpu_custom_call.1} parent=11 // pred_check
          %p274 = pneg %p153
        $region30: #{tpu_custom_call.1} parent=11 // pred_check_branch
          %276 = sbr.rel (%p274) target = $region32
        $region31: #{tpu_custom_call.1} parent=11 // pred_region
          _
        $region32: #{tpu_custom_call.1} parent=11 // pred_fallthru
          _
        // Predicated region
        $region33: #{tpu_custom_call.1} parent=11 // pred_check
          %p277 = pneg %p174
        $region34: #{tpu_custom_call.1} parent=11 // pred_check_branch
          %279 = sbr.rel (%p277) target = $region36
        $region35: #{tpu_custom_call.1} parent=11 // pred_region
          _
        $region36: #{tpu_custom_call.1} parent=11 // pred_fallthru
          _
        // Predicated region
        $region37: #{tpu_custom_call.1} parent=11 // pred_check
          %p280 = pneg %p195
        $region38: #{tpu_custom_call.1} parent=11 // pred_check_branch
          %282 = sbr.rel (%p280) target = $region40
        $region39: #{tpu_custom_call.1} parent=11 // pred_region
          _
        $region40: #{tpu_custom_call.1} parent=11 // pred_fallthru
          _
      $region12: #{tpu_custom_call.1} parent=5 // pred_fallthru
        _
      %p283 = scmp.lt.s32.totalorder %s22, 2
      // Predicated region
      $region41: #{tpu_custom_call.1} parent=5 // pred_check
        %p284 = pneg %p283
      $region42: #{tpu_custom_call.1} parent=5 // pred_check_branch
        %286 = sbr.rel (%p284) target = $region44
      $region43: #{tpu_custom_call.1} parent=5 // pred_region
        // Predicated region
        $region45: #{tpu_custom_call.1} parent=43 // pred_check
          %p287 = pneg %p63
        $region46: #{tpu_custom_call.1} parent=43 // pred_check_branch
          %289 = sbr.rel (%p287) target = $region48
        $region47: #{tpu_custom_call.1} parent=43 // pred_region
          %s290 = sand.u32 %s53, 1
          %s291 = scalar_lea.sflag [#allocation3], %s290
          %s292 = sand.u32 %s53, 1
          %s293 = smul.addr %s292, 64
          %s294 = scalar_lea.vmem [#allocation6], %s293
          %s295 = smul.u32 8, %s22
          %s297 = ssub.s32 1024, 1024
          %298 = vsyncadd %s291, %s297
          %s299 = smul.addr %s295, 128
          %s300 = scalar_lea.hbm %s1, %s299
          %s301 = sshll.u32 %s294, 4
          %s302 = int_to_ptr.vmem [resolvable:$true] %s301
          %307 = dma.hbm_to_vmem [thread:$0]  %s300, 1024, %s302, %s291, 128, 128, 8
        $region48: #{tpu_custom_call.1} parent=43 // pred_fallthru
          _
      $region44: #{tpu_custom_call.1} parent=5 // pred_fallthru
        _
      %p308 = scmp.le.s32.totalorder 1, %s22
      %p309 = scmp.lt.s32.totalorder %s22, 3
      %p310 = pnand %p308, %p309
      %p311 = pneg %p310
      // Predicated region
      $region49: #{tpu_custom_call.1} parent=5 // pred_check
        _
      $region50: #{tpu_custom_call.1} parent=5 // pred_check_branch
        %313 = sbr.rel (%p310) target = $region52
      $region51: #{tpu_custom_call.1} parent=5 // pred_region
        %s314 = ssub.s32 %s22, 1
        // Predicated region
        $region53: #{tpu_custom_call.1} parent=51 // pred_check
          %p315 = pneg %p43
        $region54: #{tpu_custom_call.1} parent=51 // pred_check_branch
          %317 = sbr.rel (%p315) target = $region56
        $region55: #{tpu_custom_call.1} parent=51 // pred_region
          %318 = dma.done [#allocation5], 16
        $region56: #{tpu_custom_call.1} parent=51 // pred_fallthru
          _
        %s319 = sand.u32 %s56, 1
        %s320 = scalar_lea.sflag [#allocation3], %s319
        %s321 = sand.u32 %s56, 1
        %s322 = smul.addr %s321, 64
        %s323 = scalar_lea.vmem [#allocation6], %s322
        // Predicated region
        $region57: #{tpu_custom_call.1} parent=51 // pred_check
          %p324 = pneg %p69
        $region58: #{tpu_custom_call.1} parent=51 // pred_check_branch
          %326 = sbr.rel (%p324) target = $region60
        $region59: #{tpu_custom_call.1} parent=51 // pred_region
          %327 = dma.done %s320, 1024
        $region60: #{tpu_custom_call.1} parent=51 // pred_fallthru
          _
        // Predicated region
        $region61: #{tpu_custom_call.1} parent=51 // pred_check
          %p328 = pneg %p90
        $region62: #{tpu_custom_call.1} parent=51 // pred_check_branch
          %330 = sbr.rel (%p328) target = $region64
        $region63: #{tpu_custom_call.1} parent=51 // pred_region
          %331 = dma.done [#allocation8], 1024
        $region64: #{tpu_custom_call.1} parent=51 // pred_fallthru
          _
        // Predicated region
        $region65: #{tpu_custom_call.1} parent=51 // pred_check
          %p332 = pneg %p132
        $region66: #{tpu_custom_call.1} parent=51 // pred_check_branch
          %334 = sbr.rel (%p332) target = $region68
        $region67: #{tpu_custom_call.1} parent=51 // pred_region
          %335 = dma.done [#allocation8], 1024
        $region68: #{tpu_custom_call.1} parent=51 // pred_fallthru
          _
        %336 = sfence
        %p337 = pneg %p43
        %p338 = pneg %p40
        %s339 = sand.u32 %s56, 1
        %s340 = scalar_lea.sflag [#allocation3], %s339
        %s341 = sand.u32 %s56, 1
        %s342 = smul.addr %s341, 64
        %s343 = scalar_lea.vmem [#allocation6], %s342
        %p344 = pneg %p69
        %p345 = pneg %p66
        %p346 = pneg %p90
        %p347 = pneg %p87
        %p348 = pneg %p111
        %p349 = pneg %p108
        %p350 = pneg %p132
        %p351 = pneg %p129
        %p352 = pneg %p153
        %p353 = pneg %p150
        %p354 = pneg %p174
        %p355 = pneg %p171
        %p356 = pneg %p195
        %p357 = pneg %p192
        %p358 = pneg %p221
        %p359 = pneg %p218
        %s360 = sand.u32 %s208, 1
        %s361 = scalar_lea.sflag [#allocation4], %s360
        %s362 = sand.u32 %s208, 1
        %s363 = smul.addr %s362, 2
        %s364 = scalar_lea.vmem [#allocation10], %s363
        %s365 = smul.u32 8, %s27
        %s366 = smul.u32 2, %s27
        %s368 = sld [smem:[#allocation2]]
        %s369 = sld [smem:[#allocation2 + $0x1]]
        %s370 = sld [smem:[#allocation2 + $0x2]]
        %s371 = sld [smem:[#allocation2 + $0x3]]
        %v372 = vld [vmem:[%s323] sm:$0xff]
        %v373 = vld [vmem:[%s323 + $0x8] sm:$0xff]
        %v374 = vld [vmem:[%s323 + $0x10] sm:$0xff]
        %v375 = vld [vmem:[%s323 + $0x18] sm:$0xff]
        %v376 = vld [vmem:[%s323 + $0x20] sm:$0xff]
        %v377 = vld [vmem:[%s323 + $0x28] sm:$0xff]
        %v378 = vld [vmem:[%s323 + $0x30] sm:$0xff]
        %v379 = vld [vmem:[%s323 + $0x38] sm:$0xff]
        %v380 = vunpack.c.0.s8 %v372
        %v381 = vunpack.c.1.s8 %v372
        %v382 = vunpack.c.2.s8 %v372
        %v383 = vunpack.c.3.s8 %v372
        %v384 = vunpack.c.0.s8 %v373
        %v385 = vunpack.c.1.s8 %v373
        %v386 = vunpack.c.2.s8 %v373
        %v387 = vunpack.c.3.s8 %v373
        %v388 = vunpack.c.0.s8 %v374
        %v389 = vunpack.c.1.s8 %v374
        %v390 = vunpack.c.2.s8 %v374
        %v391 = vunpack.c.3.s8 %v374
        %v392 = vunpack.c.0.s8 %v375
        %v393 = vunpack.c.1.s8 %v375
        %v394 = vunpack.c.2.s8 %v375
        %v395 = vunpack.c.3.s8 %v375
        %v396 = vunpack.c.0.s8 %v376
        %v397 = vunpack.c.1.s8 %v376
        %v398 = vunpack.c.2.s8 %v376
        %v399 = vunpack.c.3.s8 %v376
        %v400 = vunpack.c.0.s8 %v377
        %v401 = vunpack.c.1.s8 %v377
        %v402 = vunpack.c.2.s8 %v377
        %v403 = vunpack.c.3.s8 %v377
        %v404 = vunpack.c.0.s8 %v378
        %v405 = vunpack.c.1.s8 %v378
        %v406 = vunpack.c.2.s8 %v378
        %v407 = vunpack.c.3.s8 %v378
        %v408 = vunpack.c.0.s8 %v379
        %v409 = vunpack.c.1.s8 %v379
        %v410 = vunpack.c.2.s8 %v379
        %v411 = vunpack.c.3.s8 %v379
        %v412 = vcvt.s32.f32 %v380
        %v413 = vcvt.s32.f32 %v381
        %v414 = vcvt.s32.f32 %v382
        %v415 = vcvt.s32.f32 %v383
        %v416 = vcvt.s32.f32 %v384
        %v417 = vcvt.s32.f32 %v385
        %v418 = vcvt.s32.f32 %v386
        %v419 = vcvt.s32.f32 %v387
        %v420 = vcvt.s32.f32 %v388
        %v421 = vcvt.s32.f32 %v389
        %v422 = vcvt.s32.f32 %v390
        %v423 = vcvt.s32.f32 %v391
        %v424 = vcvt.s32.f32 %v392
        %v425 = vcvt.s32.f32 %v393
        %v426 = vcvt.s32.f32 %v394
        %v427 = vcvt.s32.f32 %v395
        %v428 = vcvt.s32.f32 %v396
        %v429 = vcvt.s32.f32 %v397
        %v430 = vcvt.s32.f32 %v398
        %v431 = vcvt.s32.f32 %v399
        %v432 = vcvt.s32.f32 %v400
        %v433 = vcvt.s32.f32 %v401
        %v434 = vcvt.s32.f32 %v402
        %v435 = vcvt.s32.f32 %v403
        %v436 = vcvt.s32.f32 %v404
        %v437 = vcvt.s32.f32 %v405
        %v438 = vcvt.s32.f32 %v406
        %v439 = vcvt.s32.f32 %v407
        %v440 = vcvt.s32.f32 %v408
        %v441 = vcvt.s32.f32 %v409
        %v442 = vcvt.s32.f32 %v410
        %v443 = vcvt.s32.f32 %v411
        %v444 = vunpack.c.l.s8.bf16 %v372
        %v445 = vunpack.c.h.s8.bf16 %v372
        %v446 = vunpack.c.l.s8.bf16 %v373
        %v447 = vunpack.c.h.s8.bf16 %v373
        %v448 = vunpack.c.l.s8.bf16 %v374
        %v449 = vunpack.c.h.s8.bf16 %v374
        %v450 = vunpack.c.l.s8.bf16 %v375
        %v451 = vunpack.c.h.s8.bf16 %v375
        %v452 = vunpack.c.l.s8.bf16 %v376
        %v453 = vunpack.c.h.s8.bf16 %v376
        %v454 = vunpack.c.l.s8.bf16 %v377
        %v455 = vunpack.c.h.s8.bf16 %v377
        %v456 = vunpack.c.l.s8.bf16 %v378
        %v457 = vunpack.c.h.s8.bf16 %v378
        %v458 = vunpack.c.l.s8.bf16 %v379
        %v459 = vunpack.c.h.s8.bf16 %v379
        %v460 = vld [vmem:[#allocation7] sm:$0xf]
        %v461 = vld [vmem:[#allocation7 + $0x4] sm:$0xf]
        %v462 = vld [vmem:[#allocation7 + $0x8] sm:$0xf]
        %v463 = vld [vmem:[#allocation7 + $0xc] sm:$0xf]
        %v464 = vld [vmem:[#allocation7 + $0x10] sm:$0xf]
        %v465 = vld [vmem:[#allocation7 + $0x14] sm:$0xf]
        %v466 = vld [vmem:[#allocation7 + $0x18] sm:$0xf]
        %v467 = vld [vmem:[#allocation7 + $0x1c] sm:$0xf]
        %v468 = vld [vmem:[#allocation7 + $0x20] sm:$0xf]
        %v469 = vld [vmem:[#allocation7 + $0x24] sm:$0xf]
        %v470 = vld [vmem:[#allocation7 + $0x28] sm:$0xf]
        %v471 = vld [vmem:[#allocation7 + $0x2c] sm:$0xf]
        %v472 = vld [vmem:[#allocation7 + $0x30] sm:$0xf]
        %v473 = vld [vmem:[#allocation7 + $0x34] sm:$0xf]
        %v474 = vld [vmem:[#allocation7 + $0x38] sm:$0xf]
        %v475 = vld [vmem:[#allocation7 + $0x3c] sm:$0xf]
        %v476 = vld [vmem:[%s3] sm:$0x1]
        %v478 = vlaneseq
        %v479 = vshrl.u32 %v478, 7
        %v480 = vsub.s32 0, %v479
        %v481 = vrot.slane %v476, %v480
        %v499 = vunpack.c.l.b16 %v460
        %v500 = vunpack.c.l.b16 %v461
        %v501 = vunpack.c.l.b16 %v462
        %v502 = vunpack.c.l.b16 %v463
        %v503 = vunpack.c.l.b16 %v464
        %v504 = vunpack.c.l.b16 %v465
        %v505 = vunpack.c.l.b16 %v466
        %v506 = vunpack.c.l.b16 %v467
        %v507 = vunpack.c.l.b16 %v468
        %v508 = vunpack.c.l.b16 %v469
        %v509 = vunpack.c.l.b16 %v470
        %v510 = vunpack.c.l.b16 %v471
        %v511 = vunpack.c.l.b16 %v472
        %v512 = vunpack.c.l.b16 %v473
        %v513 = vunpack.c.l.b16 %v474
        %v514 = vunpack.c.l.b16 %v475
        %v515 = vpack.c.b16 %v500, %v499
        %v516 = vpack.c.b16 %v502, %v501
        %v517 = vpack.c.b16 %v504, %v503
        %v518 = vpack.c.b16 %v506, %v505
        %v519 = vpack.c.b16 %v508, %v507
        %v520 = vpack.c.b16 %v510, %v509
        %v521 = vpack.c.b16 %v512, %v511
        %v522 = vpack.c.b16 %v514, %v513
        %531 = vmatprep.subr.bf16.mxu0 0
        %532 = vmatpush1.bf16.msra.mxu0 %v522
        %533 = vmatprep.subr.bf16.mxu0 0
        %534 = vmatpush1.bf16.msra.mxu0 %v521
        %535 = vmatprep.subr.bf16.mxu0 0
        %536 = vmatpush1.bf16.msra.mxu0 %v520
        %537 = vmatprep.subr.bf16.mxu0 0
        %538 = vmatpush1.bf16.msra.mxu0 %v519
        %539 = vmatprep.subr.bf16.mxu0 0
        %540 = vmatpush1.bf16.msra.mxu0 %v518
        %541 = vmatprep.subr.bf16.mxu0 0
        %542 = vmatpush1.bf16.msra.mxu0 %v517
        %543 = vmatprep.subr.bf16.mxu0 0
        %544 = vmatpush1.bf16.msra.mxu0 %v516
        %545 = vmatprep.subr.bf16.mxu0 0
        %546 = vmatpush1.bf16.msra.mxu0 %v515
        %547 = vmatprep.subr.bf16.mxu0 0
        %548 = vmatpush2.bf16.msra.mxu0 0
        %549 = vmatprep.subr.bf16.mxu0 0
        %550 = vmatpush2.bf16.msra.mxu0 0
        %551 = vmatprep.subr.bf16.mxu0 0
        %552 = vmatpush2.bf16.msra.mxu0 0
        %553 = vmatprep.subr.bf16.mxu0 0
        %554 = vmatpush2.bf16.msra.mxu0 0
        %555 = vmatprep.subr.bf16.mxu0 0
        %556 = vmatpush2.bf16.msra.mxu0 0
        %557 = vmatprep.subr.bf16.mxu0 0
        %558 = vmatpush2.bf16.msra.mxu0 0
        %559 = vmatprep.subr.bf16.mxu0 0
        %560 = vmatpush2.bf16.msra.mxu0 0
        %561 = vmatprep.subr.bf16.mxu0 0
        %562 = vmatpush2.bf16.msra.mxu0 0
        %563 = vmatprep.mubr.bf16.mxu0 0
        %564 = vmatmul.mubr.bf16.gmra.mxu0 %v444
        %v565 = vpop.f32.mrf.mxu0
        %v566 = vadd.f32 %v481, %v565
        %v567 = vpop.f32.mrf.mxu0
        %v568 = vpop.f32.mrf.mxu0
        %v569 = vadd.f32 %v481, %v568
        %v570 = vpop.f32.mrf.mxu0
        %571 = vmatprep.mubr.bf16.mxu0 0
        %572 = vmatmul.mubr.bf16.gmra.mxu0 %v445
        %v573 = vpop.f32.mrf.mxu0
        %v574 = vadd.f32 %v481, %v573
        %v575 = vpop.f32.mrf.mxu0
        %v576 = vpop.f32.mrf.mxu0
        %v577 = vadd.f32 %v481, %v576
        %v578 = vpop.f32.mrf.mxu0
        %579 = vmatprep.mubr.bf16.mxu0 0
        %580 = vmatmul.mubr.bf16.gmra.mxu0 %v446
        %v581 = vpop.f32.mrf.mxu0
        %v582 = vadd.f32 %v481, %v581
        %v583 = vpop.f32.mrf.mxu0
        %v584 = vpop.f32.mrf.mxu0
        %v585 = vadd.f32 %v481, %v584
        %v586 = vpop.f32.mrf.mxu0
        %587 = vmatprep.mubr.bf16.mxu0 0
        %588 = vmatmul.mubr.bf16.gmra.mxu0 %v447
        %v589 = vpop.f32.mrf.mxu0
        %v590 = vadd.f32 %v481, %v589
        %v591 = vpop.f32.mrf.mxu0
        %v592 = vpop.f32.mrf.mxu0
        %v593 = vadd.f32 %v481, %v592
        %v594 = vpop.f32.mrf.mxu0
        %595 = vmatprep.mubr.bf16.mxu0 0
        %596 = vmatmul.mubr.bf16.gmra.mxu0 %v448
        %v597 = vpop.f32.mrf.mxu0
        %v598 = vadd.f32 %v481, %v597
        %v599 = vpop.f32.mrf.mxu0
        %v600 = vpop.f32.mrf.mxu0
        %v601 = vadd.f32 %v481, %v600
        %v602 = vpop.f32.mrf.mxu0
        %603 = vmatprep.mubr.bf16.mxu0 0
        %604 = vmatmul.mubr.bf16.gmra.mxu0 %v449
        %v605 = vpop.f32.mrf.mxu0
        %v606 = vadd.f32 %v481, %v605
        %v607 = vpop.f32.mrf.mxu0
        %v608 = vpop.f32.mrf.mxu0
        %v609 = vadd.f32 %v481, %v608
        %v610 = vpop.f32.mrf.mxu0
        %611 = vmatprep.mubr.bf16.mxu0 0
        %612 = vmatmul.mubr.bf16.gmra.mxu0 %v450
        %v613 = vpop.f32.mrf.mxu0
        %v614 = vadd.f32 %v481, %v613
        %v615 = vpop.f32.mrf.mxu0
        %v616 = vpop.f32.mrf.mxu0
        %v617 = vadd.f32 %v481, %v616
        %v618 = vpop.f32.mrf.mxu0
        %619 = vmatprep.mubr.bf16.mxu0 0
        %620 = vmatmul.mubr.bf16.gmra.mxu0 %v451
        %v621 = vpop.f32.mrf.mxu0
        %v622 = vadd.f32 %v481, %v621
        %v623 = vpop.f32.mrf.mxu0
        %v624 = vpop.f32.mrf.mxu0
        %v625 = vadd.f32 %v481, %v624
        %v626 = vpop.f32.mrf.mxu0
        %627 = vmatprep.mubr.bf16.mxu0 0
        %628 = vmatmul.mubr.bf16.gmra.mxu0 %v452
        %v629 = vpop.f32.mrf.mxu0
        %v630 = vadd.f32 %v481, %v629
        %v631 = vpop.f32.mrf.mxu0
        %v632 = vpop.f32.mrf.mxu0
        %v633 = vadd.f32 %v481, %v632
        %v634 = vpop.f32.mrf.mxu0
        %635 = vmatprep.mubr.bf16.mxu0 0
        %636 = vmatmul.mubr.bf16.gmra.mxu0 %v453
        %v637 = vpop.f32.mrf.mxu0
        %v638 = vadd.f32 %v481, %v637
        %v639 = vpop.f32.mrf.mxu0
        %v640 = vpop.f32.mrf.mxu0
        %v641 = vadd.f32 %v481, %v640
        %v642 = vpop.f32.mrf.mxu0
        %643 = vmatprep.mubr.bf16.mxu0 0
        %644 = vmatmul.mubr.bf16.gmra.mxu0 %v454
        %v645 = vpop.f32.mrf.mxu0
        %v646 = vadd.f32 %v481, %v645
        %v647 = vpop.f32.mrf.mxu0
        %v648 = vpop.f32.mrf.mxu0
        %v649 = vadd.f32 %v481, %v648
        %v650 = vpop.f32.mrf.mxu0
        %651 = vmatprep.mubr.bf16.mxu0 0
        %652 = vmatmul.mubr.bf16.gmra.mxu0 %v455
        %v653 = vpop.f32.mrf.mxu0
        %v654 = vadd.f32 %v481, %v653
        %v655 = vpop.f32.mrf.mxu0
        %v656 = vpop.f32.mrf.mxu0
        %v657 = vadd.f32 %v481, %v656
        %v658 = vpop.f32.mrf.mxu0
        %659 = vmatprep.mubr.bf16.mxu0 0
        %660 = vmatmul.mubr.bf16.gmra.mxu0 %v456
        %v661 = vpop.f32.mrf.mxu0
        %v662 = vadd.f32 %v481, %v661
        %v663 = vpop.f32.mrf.mxu0
        %v664 = vpop.f32.mrf.mxu0
        %v665 = vadd.f32 %v481, %v664
        %v666 = vpop.f32.mrf.mxu0
        %667 = vmatprep.mubr.bf16.mxu0 0
        %668 = vmatmul.mubr.bf16.gmra.mxu0 %v457
        %v669 = vpop.f32.mrf.mxu0
        %v670 = vadd.f32 %v481, %v669
        %v671 = vpop.f32.mrf.mxu0
        %v672 = vpop.f32.mrf.mxu0
        %v673 = vadd.f32 %v481, %v672
        %v674 = vpop.f32.mrf.mxu0
        %675 = vmatprep.mubr.bf16.mxu0 0
        %676 = vmatmul.mubr.bf16.gmra.mxu0 %v458
        %v677 = vpop.f32.mrf.mxu0
        %v678 = vadd.f32 %v481, %v677
        %v679 = vpop.f32.mrf.mxu0
        %v680 = vpop.f32.mrf.mxu0
        %v681 = vadd.f32 %v481, %v680
        %v682 = vpop.f32.mrf.mxu0
        %683 = vmatprep.mubr.bf16.mxu0 0
        %684 = vmatmul.mubr.bf16.gmra.mxu0 %v459
        %v685 = vpop.f32.mrf.mxu0
        %v686 = vadd.f32 %v481, %v685
        %v687 = vpop.f32.mrf.mxu0
        %v688 = vpop.f32.mrf.mxu0
        %v689 = vadd.f32 %v481, %v688
        %v690 = vpop.f32.mrf.mxu0
        %691 = vdwg.mxu0
        %v692 = vmax.f32 %v566, 0.0
        %v693 = vmax.f32 %v569, 0.0
        %v694 = vmax.f32 %v574, 0.0
        %v695 = vmax.f32 %v577, 0.0
        %v696 = vmax.f32 %v582, 0.0
        %v697 = vmax.f32 %v585, 0.0
        %v698 = vmax.f32 %v590, 0.0
        %v699 = vmax.f32 %v593, 0.0
        %v700 = vmax.f32 %v598, 0.0
        %v701 = vmax.f32 %v601, 0.0
        %v702 = vmax.f32 %v606, 0.0
        %v703 = vmax.f32 %v609, 0.0
        %v704 = vmax.f32 %v614, 0.0
        %v705 = vmax.f32 %v617, 0.0
        %v706 = vmax.f32 %v622, 0.0
        %v707 = vmax.f32 %v625, 0.0
        %v708 = vmax.f32 %v630, 0.0
        %v709 = vmax.f32 %v633, 0.0
        %v710 = vmax.f32 %v638, 0.0
        %v711 = vmax.f32 %v641, 0.0
        %v712 = vmax.f32 %v646, 0.0
        %v713 = vmax.f32 %v649, 0.0
        %v714 = vmax.f32 %v654, 0.0
        %v715 = vmax.f32 %v657, 0.0
        %v716 = vmax.f32 %v662, 0.0
        %v717 = vmax.f32 %v665, 0.0
        %v718 = vmax.f32 %v670, 0.0
        %v719 = vmax.f32 %v673, 0.0
        %v720 = vmax.f32 %v678, 0.0
        %v721 = vmax.f32 %v681, 0.0
        %v722 = vmax.f32 %v686, 0.0
        %v723 = vmax.f32 %v689, 0.0
        %v724 = vpack.c.bf16 %v693, %v692
        %v725 = vpack.c.bf16 %v695, %v694
        %v726 = vpack.c.bf16 %v697, %v696
        %v727 = vpack.c.bf16 %v699, %v698
        %v728 = vpack.c.bf16 %v701, %v700
        %v729 = vpack.c.bf16 %v703, %v702
        %v730 = vpack.c.bf16 %v705, %v704
        %v731 = vpack.c.bf16 %v707, %v706
        %v732 = vpack.c.bf16 %v709, %v708
        %v733 = vpack.c.bf16 %v711, %v710
        %v734 = vpack.c.bf16 %v713, %v712
        %v735 = vpack.c.bf16 %v715, %v714
        %v736 = vpack.c.bf16 %v717, %v716
        %v737 = vpack.c.bf16 %v719, %v718
        %v738 = vpack.c.bf16 %v721, %v720
        %v739 = vpack.c.bf16 %v723, %v722
        %v740 = vld [vmem:[#allocation9] sm:$0xf]
        %v741 = vld [vmem:[#allocation9 + $0x4] sm:$0xf]
        %v742 = vld [vmem:[#allocation9 + $0x8] sm:$0xf]
        %v743 = vld [vmem:[#allocation9 + $0xc] sm:$0xf]
        %v744 = vld [vmem:[#allocation9 + $0x10] sm:$0xf]
        %v745 = vld [vmem:[#allocation9 + $0x14] sm:$0xf]
        %v746 = vld [vmem:[#allocation9 + $0x18] sm:$0xf]
        %v747 = vld [vmem:[#allocation9 + $0x1c] sm:$0xf]
        %v748 = vld [vmem:[#allocation9 + $0x20] sm:$0xf]
        %v749 = vld [vmem:[#allocation9 + $0x24] sm:$0xf]
        %v750 = vld [vmem:[#allocation9 + $0x28] sm:$0xf]
        %v751 = vld [vmem:[#allocation9 + $0x2c] sm:$0xf]
        %v752 = vld [vmem:[#allocation9 + $0x30] sm:$0xf]
        %v753 = vld [vmem:[#allocation9 + $0x34] sm:$0xf]
        %v754 = vld [vmem:[#allocation9 + $0x38] sm:$0xf]
        %v755 = vld [vmem:[#allocation9 + $0x3c] sm:$0xf]
        %v756 = vld [vmem:[%s5] sm:$0x1]
        %v758 = vlaneseq
        %v759 = vshrl.u32 %v758, 7
        %v760 = vsub.s32 0, %v759
        %v761 = vrot.slane %v756, %v760
        %v779 = vunpack.c.l.b16 %v740
        %v780 = vunpack.c.l.b16 %v741
        %v781 = vunpack.c.l.b16 %v742
        %v782 = vunpack.c.l.b16 %v743
        %v783 = vunpack.c.l.b16 %v744
        %v784 = vunpack.c.l.b16 %v745
        %v785 = vunpack.c.l.b16 %v746
        %v786 = vunpack.c.l.b16 %v747
        %v787 = vunpack.c.l.b16 %v748
        %v788 = vunpack.c.l.b16 %v749
        %v789 = vunpack.c.l.b16 %v750
        %v790 = vunpack.c.l.b16 %v751
        %v791 = vunpack.c.l.b16 %v752
        %v792 = vunpack.c.l.b16 %v753
        %v793 = vunpack.c.l.b16 %v754
        %v794 = vunpack.c.l.b16 %v755
        %v795 = vpack.c.b16 %v780, %v779
        %v796 = vpack.c.b16 %v782, %v781
        %v797 = vpack.c.b16 %v784, %v783
        %v798 = vpack.c.b16 %v786, %v785
        %v799 = vpack.c.b16 %v788, %v787
        %v800 = vpack.c.b16 %v790, %v789
        %v801 = vpack.c.b16 %v792, %v791
        %v802 = vpack.c.b16 %v794, %v793
        %811 = vmatprep.subr.bf16.mxu0 0
        %812 = vmatpush1.bf16.msra.mxu0 %v802
        %813 = vmatprep.subr.bf16.mxu0 0
        %814 = vmatpush1.bf16.msra.mxu0 %v801
        %815 = vmatprep.subr.bf16.mxu0 0
        %816 = vmatpush1.bf16.msra.mxu0 %v800
        %817 = vmatprep.subr.bf16.mxu0 0
        %818 = vmatpush1.bf16.msra.mxu0 %v799
        %819 = vmatprep.subr.bf16.mxu0 0
        %820 = vmatpush1.bf16.msra.mxu0 %v798
        %821 = vmatprep.subr.bf16.mxu0 0
        %822 = vmatpush1.bf16.msra.mxu0 %v797
        %823 = vmatprep.subr.bf16.mxu0 0
        %824 = vmatpush1.bf16.msra.mxu0 %v796
        %825 = vmatprep.subr.bf16.mxu0 0
        %826 = vmatpush1.bf16.msra.mxu0 %v795
        %827 = vmatprep.subr.bf16.mxu0 0
        %828 = vmatpush2.bf16.msra.mxu0 0
        %829 = vmatprep.subr.bf16.mxu0 0
        %830 = vmatpush2.bf16.msra.mxu0 0
        %831 = vmatprep.subr.bf16.mxu0 0
        %832 = vmatpush2.bf16.msra.mxu0 0
        %833 = vmatprep.subr.bf16.mxu0 0
        %834 = vmatpush2.bf16.msra.mxu0 0
        %835 = vmatprep.subr.bf16.mxu0 0
        %836 = vmatpush2.bf16.msra.mxu0 0
        %837 = vmatprep.subr.bf16.mxu0 0
        %838 = vmatpush2.bf16.msra.mxu0 0
        %839 = vmatprep.subr.bf16.mxu0 0
        %840 = vmatpush2.bf16.msra.mxu0 0
        %841 = vmatprep.subr.bf16.mxu0 0
        %842 = vmatpush2.bf16.msra.mxu0 0
        %843 = vmatprep.mubr.bf16.mxu0 0
        %844 = vmatmul.mubr.bf16.gmra.mxu0 %v724
        %v845 = vpop.f32.mrf.mxu0
        %v846 = vadd.f32 %v761, %v845
        %v847 = vpop.f32.mrf.mxu0
        %v848 = vpop.f32.mrf.mxu0
        %v849 = vadd.f32 %v761, %v848
        %v850 = vpop.f32.mrf.mxu0
        %851 = vmatprep.mubr.bf16.mxu0 0
        %852 = vmatmul.mubr.bf16.gmra.mxu0 %v725
        %v853 = vpop.f32.mrf.mxu0
        %v854 = vadd.f32 %v761, %v853
        %v855 = vpop.f32.mrf.mxu0
        %v856 = vpop.f32.mrf.mxu0
        %v857 = vadd.f32 %v761, %v856
        %v858 = vpop.f32.mrf.mxu0
        %859 = vmatprep.mubr.bf16.mxu0 0
        %860 = vmatmul.mubr.bf16.gmra.mxu0 %v726
        %v861 = vpop.f32.mrf.mxu0
        %v862 = vadd.f32 %v761, %v861
        %v863 = vpop.f32.mrf.mxu0
        %v864 = vpop.f32.mrf.mxu0
        %v865 = vadd.f32 %v761, %v864
        %v866 = vpop.f32.mrf.mxu0
        %867 = vmatprep.mubr.bf16.mxu0 0
        %868 = vmatmul.mubr.bf16.gmra.mxu0 %v727
        %v869 = vpop.f32.mrf.mxu0
        %v870 = vadd.f32 %v761, %v869
        %v871 = vpop.f32.mrf.mxu0
        %v872 = vpop.f32.mrf.mxu0
        %v873 = vadd.f32 %v761, %v872
        %v874 = vpop.f32.mrf.mxu0
        %875 = vmatprep.mubr.bf16.mxu0 0
        %876 = vmatmul.mubr.bf16.gmra.mxu0 %v728
        %v877 = vpop.f32.mrf.mxu0
        %v878 = vadd.f32 %v761, %v877
        %v879 = vpop.f32.mrf.mxu0
        %v880 = vpop.f32.mrf.mxu0
        %v881 = vadd.f32 %v761, %v880
        %v882 = vpop.f32.mrf.mxu0
        %883 = vmatprep.mubr.bf16.mxu0 0
        %884 = vmatmul.mubr.bf16.gmra.mxu0 %v729
        %v885 = vpop.f32.mrf.mxu0
        %v886 = vadd.f32 %v761, %v885
        %v887 = vpop.f32.mrf.mxu0
        %v888 = vpop.f32.mrf.mxu0
        %v889 = vadd.f32 %v761, %v888
        %v890 = vpop.f32.mrf.mxu0
        %891 = vmatprep.mubr.bf16.mxu0 0
        %892 = vmatmul.mubr.bf16.gmra.mxu0 %v730
        %v893 = vpop.f32.mrf.mxu0
        %v894 = vadd.f32 %v761, %v893
        %v895 = vpop.f32.mrf.mxu0
        %v896 = vpop.f32.mrf.mxu0
        %v897 = vadd.f32 %v761, %v896
        %v898 = vpop.f32.mrf.mxu0
        %899 = vmatprep.mubr.bf16.mxu0 0
        %900 = vmatmul.mubr.bf16.gmra.mxu0 %v731
        %v901 = vpop.f32.mrf.mxu0
        %v902 = vadd.f32 %v761, %v901
        %v903 = vpop.f32.mrf.mxu0
        %v904 = vpop.f32.mrf.mxu0
        %v905 = vadd.f32 %v761, %v904
        %v906 = vpop.f32.mrf.mxu0
        %907 = vmatprep.mubr.bf16.mxu0 0
        %908 = vmatmul.mubr.bf16.gmra.mxu0 %v732
        %v909 = vpop.f32.mrf.mxu0
        %v910 = vadd.f32 %v761, %v909
        %v911 = vpop.f32.mrf.mxu0
        %v912 = vpop.f32.mrf.mxu0
        %v913 = vadd.f32 %v761, %v912
        %v914 = vpop.f32.mrf.mxu0
        %915 = vmatprep.mubr.bf16.mxu0 0
        %916 = vmatmul.mubr.bf16.gmra.mxu0 %v733
        %v917 = vpop.f32.mrf.mxu0
        %v918 = vadd.f32 %v761, %v917
        %v919 = vpop.f32.mrf.mxu0
        %v920 = vpop.f32.mrf.mxu0
        %v921 = vadd.f32 %v761, %v920
        %v922 = vpop.f32.mrf.mxu0
        %923 = vmatprep.mubr.bf16.mxu0 0
        %924 = vmatmul.mubr.bf16.gmra.mxu0 %v734
        %v925 = vpop.f32.mrf.mxu0
        %v926 = vadd.f32 %v761, %v925
        %v927 = vpop.f32.mrf.mxu0
        %v928 = vpop.f32.mrf.mxu0
        %v929 = vadd.f32 %v761, %v928
        %v930 = vpop.f32.mrf.mxu0
        %931 = vmatprep.mubr.bf16.mxu0 0
        %932 = vmatmul.mubr.bf16.gmra.mxu0 %v735
        %v933 = vpop.f32.mrf.mxu0
        %v934 = vadd.f32 %v761, %v933
        %v935 = vpop.f32.mrf.mxu0
        %v936 = vpop.f32.mrf.mxu0
        %v937 = vadd.f32 %v761, %v936
        %v938 = vpop.f32.mrf.mxu0
        %939 = vmatprep.mubr.bf16.mxu0 0
        %940 = vmatmul.mubr.bf16.gmra.mxu0 %v736
        %v941 = vpop.f32.mrf.mxu0
        %v942 = vadd.f32 %v761, %v941
        %v943 = vpop.f32.mrf.mxu0
        %v944 = vpop.f32.mrf.mxu0
        %v945 = vadd.f32 %v761, %v944
        %v946 = vpop.f32.mrf.mxu0
        %947 = vmatprep.mubr.bf16.mxu0 0
        %948 = vmatmul.mubr.bf16.gmra.mxu0 %v737
        %v949 = vpop.f32.mrf.mxu0
        %v950 = vadd.f32 %v761, %v949
        %v951 = vpop.f32.mrf.mxu0
        %v952 = vpop.f32.mrf.mxu0
        %v953 = vadd.f32 %v761, %v952
        %v954 = vpop.f32.mrf.mxu0
        %955 = vmatprep.mubr.bf16.mxu0 0
        %956 = vmatmul.mubr.bf16.gmra.mxu0 %v738
        %v957 = vpop.f32.mrf.mxu0
        %v958 = vadd.f32 %v761, %v957
        %v959 = vpop.f32.mrf.mxu0
        %v960 = vpop.f32.mrf.mxu0
        %v961 = vadd.f32 %v761, %v960
        %v962 = vpop.f32.mrf.mxu0
        %963 = vmatprep.mubr.bf16.mxu0 0
        %964 = vmatmul.mubr.bf16.gmra.mxu0 %v739
        %v965 = vpop.f32.mrf.mxu0
        %v966 = vadd.f32 %v761, %v965
        %v967 = vpop.f32.mrf.mxu0
        %v968 = vpop.f32.mrf.mxu0
        %v969 = vadd.f32 %v761, %v968
        %v970 = vpop.f32.mrf.mxu0
        %971 = vdwg.mxu0
        %v972 = vmax.f32 %v846, 0.0
        %v973 = vmax.f32 %v849, 0.0
        %v974 = vmax.f32 %v854, 0.0
        %v975 = vmax.f32 %v857, 0.0
        %v976 = vmax.f32 %v862, 0.0
        %v977 = vmax.f32 %v865, 0.0
        %v978 = vmax.f32 %v870, 0.0
        %v979 = vmax.f32 %v873, 0.0
        %v980 = vmax.f32 %v878, 0.0
        %v981 = vmax.f32 %v881, 0.0
        %v982 = vmax.f32 %v886, 0.0
        %v983 = vmax.f32 %v889, 0.0
        %v984 = vmax.f32 %v894, 0.0
        %v985 = vmax.f32 %v897, 0.0
        %v986 = vmax.f32 %v902, 0.0
        %v987 = vmax.f32 %v905, 0.0
        %v988 = vmax.f32 %v910, 0.0
        %v989 = vmax.f32 %v913, 0.0
        %v990 = vmax.f32 %v918, 0.0
        %v991 = vmax.f32 %v921, 0.0
        %v992 = vmax.f32 %v926, 0.0
        %v993 = vmax.f32 %v929, 0.0
        %v994 = vmax.f32 %v934, 0.0
        %v995 = vmax.f32 %v937, 0.0
        %v996 = vmax.f32 %v942, 0.0
        %v997 = vmax.f32 %v945, 0.0
        %v998 = vmax.f32 %v950, 0.0
        %v999 = vmax.f32 %v953, 0.0
        %v1000 = vmax.f32 %v958, 0.0
        %v1001 = vmax.f32 %v961, 0.0
        %v1002 = vmax.f32 %v966, 0.0
        %v1003 = vmax.f32 %v969, 0.0
        %v1004 = vld [vmem:[%s6] sm:$0x1]
        %v1005 = vstv %s370
        %1006 = vmatprep.subr.mxu0 0.0
        %1007 = vmatpush1.xpose.msra.mxu0 %v987
        %1008 = vmatprep.subr.mxu0 0.0
        %1009 = vmatpush1.xpose.msra.mxu0 %v986
        %1010 = vmatprep.subr.mxu0 0.0
        %1011 = vmatpush1.xpose.msra.mxu0 %v985
        %1012 = vmatprep.subr.mxu0 0.0
        %1013 = vmatpush1.xpose.msra.mxu0 %v984
        %1014 = vmatprep.subr.mxu0 0.0
        %1015 = vmatpush1.xpose.msra.mxu0 %v983
        %1016 = vmatprep.subr.mxu0 0.0
        %1017 = vmatpush1.xpose.msra.mxu0 %v982
        %1018 = vmatprep.subr.mxu0 0.0
        %1019 = vmatpush1.xpose.msra.mxu0 %v981
        %1020 = vmatprep.subr.mxu0 0.0
        %1021 = vmatpush1.xpose.msra.mxu0 %v980
        %1022 = vmatprep.subr.mxu0 0.0
        %1023 = vmatpush1.xpose.msra.mxu0 %v979
        %1024 = vmatprep.subr.mxu0 0.0
        %1025 = vmatpush1.xpose.msra.mxu0 %v978
        %1026 = vmatprep.subr.mxu0 0.0
        %1027 = vmatpush1.xpose.msra.mxu0 %v977
        %1028 = vmatprep.subr.mxu0 0.0
        %1029 = vmatpush1.xpose.msra.mxu0 %v976
        %1030 = vmatprep.subr.mxu0 0.0
        %1031 = vmatpush1.xpose.msra.mxu0 %v975
        %1032 = vmatprep.subr.mxu0 0.0
        %1033 = vmatpush1.xpose.msra.mxu0 %v974
        %1034 = vmatprep.subr.mxu0 0.0
        %1035 = vmatpush1.xpose.msra.mxu0 %v973
        %1036 = vmatprep.subr.mxu0 0.0
        %1037 = vmatpush1.xpose.msra.mxu0 %v972
        %1038 = vmatprep.subr.mxu0 0.0
        %1039 = vmatpush2.xpose.msra.mxu0 %v1003
        %1040 = vmatprep.subr.mxu0 0.0
        %1041 = vmatpush2.xpose.msra.mxu0 %v1002
        %1042 = vmatprep.subr.mxu0 0.0
        %1043 = vmatpush2.xpose.msra.mxu0 %v1001
        %1044 = vmatprep.subr.mxu0 0.0
        %1045 = vmatpush2.xpose.msra.mxu0 %v1000
        %1046 = vmatprep.subr.mxu0 0.0
        %1047 = vmatpush2.xpose.msra.mxu0 %v999
        %1048 = vmatprep.subr.mxu0 0.0
        %1049 = vmatpush2.xpose.msra.mxu0 %v998
        %1050 = vmatprep.subr.mxu0 0.0
        %1051 = vmatpush2.xpose.msra.mxu0 %v997
        %1052 = vmatprep.subr.mxu0 0.0
        %1053 = vmatpush2.xpose.msra.mxu0 %v996
        %1054 = vmatprep.subr.mxu0 0.0
        %1055 = vmatpush2.xpose.msra.mxu0 %v995
        %1056 = vmatprep.subr.mxu0 0.0
        %1057 = vmatpush2.xpose.msra.mxu0 %v994
        %1058 = vmatprep.subr.mxu0 0.0
        %1059 = vmatpush2.xpose.msra.mxu0 %v993
        %1060 = vmatprep.subr.mxu0 0.0
        %1061 = vmatpush2.xpose.msra.mxu0 %v992
        %1062 = vmatprep.subr.mxu0 0.0
        %1063 = vmatpush2.xpose.msra.mxu0 %v991
        %1064 = vmatprep.subr.mxu0 0.0
        %1065 = vmatpush2.xpose.msra.mxu0 %v990
        %1066 = vmatprep.subr.mxu0 0.0
        %1067 = vmatpush2.xpose.msra.mxu0 %v989
        %1068 = vmatprep.subr.mxu0 0.0
        %1069 = vmatpush2.xpose.msra.mxu0 %v988
        %1070 = vmatprep.mubr.f32.mxu0 0.0
        %1071 = vmatmul.mubr.f32.gmra.mxu0 %v1004
        %v1072 = vpop.f32.mrf.mxu0
        %v1073 = vadd.f32 %v1005, %v1072
        %v1074 = vpop.f32.mrf.mxu0
        %v1075 = vadd.f32 %v1005, %v1074
        %1076 = vdwg.mxu0
        %v1077 = vld [vmem:[%s7] sm:$0x1]
        %v1078 = vstv %s371
        %1079 = vmatprep.subr.mxu0 0.0
        %1080 = vmatpush1.xpose.msra.mxu0 %v427
        %1081 = vmatprep.subr.mxu0 0.0
        %1082 = vmatpush1.xpose.msra.mxu0 %v426
        %1083 = vmatprep.subr.mxu0 0.0
        %1084 = vmatpush1.xpose.msra.mxu0 %v425
        %1085 = vmatprep.subr.mxu0 0.0
        %1086 = vmatpush1.xpose.msra.mxu0 %v424
        %1087 = vmatprep.subr.mxu0 0.0
        %1088 = vmatpush1.xpose.msra.mxu0 %v423
        %1089 = vmatprep.subr.mxu0 0.0
        %1090 = vmatpush1.xpose.msra.mxu0 %v422
        %1091 = vmatprep.subr.mxu0 0.0
        %1092 = vmatpush1.xpose.msra.mxu0 %v421
        %1093 = vmatprep.subr.mxu0 0.0
        %1094 = vmatpush1.xpose.msra.mxu0 %v420
        %1095 = vmatprep.subr.mxu0 0.0
        %1096 = vmatpush1.xpose.msra.mxu0 %v419
        %1097 = vmatprep.subr.mxu0 0.0
        %1098 = vmatpush1.xpose.msra.mxu0 %v418
        %1099 = vmatprep.subr.mxu0 0.0
        %1100 = vmatpush1.xpose.msra.mxu0 %v417
        %1101 = vmatprep.subr.mxu0 0.0
        %1102 = vmatpush1.xpose.msra.mxu0 %v416
        %1103 = vmatprep.subr.mxu0 0.0
        %1104 = vmatpush1.xpose.msra.mxu0 %v415
        %1105 = vmatprep.subr.mxu0 0.0
        %1106 = vmatpush1.xpose.msra.mxu0 %v414
        %1107 = vmatprep.subr.mxu0 0.0
        %1108 = vmatpush1.xpose.msra.mxu0 %v413
        %1109 = vmatprep.subr.mxu0 0.0
        %1110 = vmatpush1.xpose.msra.mxu0 %v412
        %1111 = vmatprep.subr.mxu0 0.0
        %1112 = vmatpush2.xpose.msra.mxu0 %v443
        %1113 = vmatprep.subr.mxu0 0.0
        %1114 = vmatpush2.xpose.msra.mxu0 %v442
        %1115 = vmatprep.subr.mxu0 0.0
        %1116 = vmatpush2.xpose.msra.mxu0 %v441
        %1117 = vmatprep.subr.mxu0 0.0
        %1118 = vmatpush2.xpose.msra.mxu0 %v440
        %1119 = vmatprep.subr.mxu0 0.0
        %1120 = vmatpush2.xpose.msra.mxu0 %v439
        %1121 = vmatprep.subr.mxu0 0.0
        %1122 = vmatpush2.xpose.msra.mxu0 %v438
        %1123 = vmatprep.subr.mxu0 0.0
        %1124 = vmatpush2.xpose.msra.mxu0 %v437
        %1125 = vmatprep.subr.mxu0 0.0
        %1126 = vmatpush2.xpose.msra.mxu0 %v436
        %1127 = vmatprep.subr.mxu0 0.0
        %1128 = vmatpush2.xpose.msra.mxu0 %v435
        %1129 = vmatprep.subr.mxu0 0.0
        %1130 = vmatpush2.xpose.msra.mxu0 %v434
        %1131 = vmatprep.subr.mxu0 0.0
        %1132 = vmatpush2.xpose.msra.mxu0 %v433
        %1133 = vmatprep.subr.mxu0 0.0
        %1134 = vmatpush2.xpose.msra.mxu0 %v432
        %1135 = vmatprep.subr.mxu0 0.0
        %1136 = vmatpush2.xpose.msra.mxu0 %v431
        %1137 = vmatprep.subr.mxu0 0.0
        %1138 = vmatpush2.xpose.msra.mxu0 %v430
        %1139 = vmatprep.subr.mxu0 0.0
        %1140 = vmatpush2.xpose.msra.mxu0 %v429
        %1141 = vmatprep.subr.mxu0 0.0
        %1142 = vmatpush2.xpose.msra.mxu0 %v428
        %1143 = vmatprep.mubr.f32.mxu0 0.0
        %1144 = vmatmul.mubr.f32.gmra.mxu0 %v1077
        %v1145 = vpop.f32.mrf.mxu0
        %v1146 = vadd.f32 %v1078, %v1145
        %v1147 = vpop.f32.mrf.mxu0
        %v1148 = vadd.f32 %v1078, %v1147
        %1149 = vdwg.mxu0
        %v1150 = vstv %s368
        %v1151 = vmul.f32 %v1073, %v1150
        %v1152 = vmul.f32 %v1075, %v1150
        %v1153 = vstv %s369
        %v1154 = vmul.f32 %v1146, %v1153
        %v1155 = vmul.f32 %v1148, %v1153
        %v1156 = vadd.f32 %v1151, %v1154
        %v1157 = vadd.f32 %v1152, %v1155
        %v1160 = vcombine.low %v1156, %v1157
        %v1162 = vunpack.c.l.s4 1966171168
        %v1163 = vunpack.c.0.s8 %v1162
        %v1164 = vlaneseq
        %v1165 = vshrl.u32 %v1164, 7
        %v1166 = vsub.s32 %v1163, %v1165
        %v1167 = vrot.slane %v1160, %v1166
        %v1169 = vunpack.c.l.s4 1966171168
        %v1170 = vunpack.c.0.s8 %v1169
        %v1171 = vlaneseq
        %v1172 = vshrl.u32 %v1171, 7
        %v1173 = vsub.s32 %v1170, %v1172
        %v1174 = vrot.slane %v1167, %v1173
        %v1176 = vlaneseq
        %vm1177 = vcmp.ge.s32.totalorder %v1176, 0
        %vm1178 = vcmp.lt.s32.totalorder %v1176, 256
        %vm1179 = vmand %vm1177, %vm1178
        %1180 = vst.msk [vmem:[%s364] sm:$0x3] %vm1179, %v1174
        %s1181 = sand.u32 %s208, 1
        %s1182 = scalar_lea.sflag [#allocation4], %s1181
        %s1183 = sand.u32 %s208, 1
        %s1184 = smul.addr %s1183, 2
        %s1185 = scalar_lea.vmem [#allocation10], %s1184
        // Predicated region
        $region69: #{tpu_custom_call.1} parent=51 // pred_check
          %p1186 = pneg %p218
        $region70: #{tpu_custom_call.1} parent=51 // pred_check_branch
          %1188 = sbr.rel (%p1186) target = $region72
        $region71: #{tpu_custom_call.1} parent=51 // pred_region
          %s1189 = smul.u32 2, %s27
          %s1191 = ssub.s32 32, 32
          %1192 = vsyncadd %s1182, %s1191
          %s1193 = smul.addr %s1189, 16
          %s1194 = scalar_lea.hbm %s8, %s1193
          %s1196 = sshll.u32 %s1185, 4
          %s1197 = int_to_ptr.vmem [resolvable:$true] %s1196
          %1199 = dma.vmem_to_hbm [thread:$0]  %s1197, 32, %s1194, %s1182
        $region72: #{tpu_custom_call.1} parent=51 // pred_fallthru
          _
      $region52: #{tpu_custom_call.1} parent=5 // pred_fallthru
        _
      %p1200 = scmp.le.s32.totalorder 2, %s22
      // Predicated region
      $region73: #{tpu_custom_call.1} parent=5 // pred_check
        %p1201 = pneg %p1200
      $region74: #{tpu_custom_call.1} parent=5 // pred_check_branch
        %1203 = sbr.rel (%p1201) target = $region76
      $region75: #{tpu_custom_call.1} parent=5 // pred_region
        %s1204 = ssub.s32 %s22, 2
        // Predicated region
        $region77: #{tpu_custom_call.1} parent=75 // pred_check
          %p1205 = pneg %p224
        $region78: #{tpu_custom_call.1} parent=75 // pred_check_branch
          %1207 = sbr.rel (%p1205) target = $region80
        $region79: #{tpu_custom_call.1} parent=75 // pred_region
          %s1208 = sand.u32 %s209, 1
          %s1209 = scalar_lea.sflag [#allocation4], %s1208
          %s1210 = sand.u32 %s209, 1
          %s1211 = smul.addr %s1210, 2
          %s1212 = scalar_lea.vmem [#allocation10], %s1211
          %1213 = dma.done %s1209, 32
        $region80: #{tpu_custom_call.1} parent=75 // pred_fallthru
          _
      $region76: #{tpu_custom_call.1} parent=5 // pred_fallthru
        _
    $region6: #{tpu_custom_call.1} parent=1 // loop_footer
      %s26 = sadd.s32 1, %s22
    $region7: #{tpu_custom_call.1} parent=1 // loop_footer_branch
      %21 = sbr.rel target = $region3
    $region8: #{tpu_custom_call.1} parent=1 // loop_exit
      _
    %1214 = vsyncpa [#allocation3], 1
    %s1215 = scalar_lea.sflag [#allocation3], 1
    %1216 = vsyncpa %s1215, 1
    %1217 = vsyncpa [#allocation8], 1
    %1218 = vsyncpa [#allocation4], 1
    %s1219 = scalar_lea.sflag [#allocation4], 1
    %1220 = vsyncpa %s1219, 1
    %1221 = vsyncpa [#allocation5], 1
    %s1222 = scalar_lea.sflag [#allocation5], 1
    %1223 = vsyncpa %s1222, 1

</llo_original>
